<compile_context>
chip_gen: v7x
topology: tpu7x:2x2x1
jax: 0.10.0
libtpu: 0.0.40
codegen_flags: <defaults>
</compile_context>

<pallas_src>
import jax
import jax.numpy as jnp
from jax.experimental import pallas as pl
from jax.experimental.pallas import tpu as pltpu

IN_F = 192
OUT_F = 192


def fc1_clamp_kernel(x_ref, w_ref, b_ref, o_ref):
    # fc1: y = x @ W + b  (MXU matmul, f32 accumulate); W/b are VMEM-resident across batch tiles.
    y = jnp.dot(x_ref[...], w_ref[...], preferred_element_type=jnp.float32)
    y = y + b_ref[...]                        # (1, OUT_F) broadcasts over the tile rows
    # Module order: clamp(y, 0, 6), then (y + 3) * (1/6).
    y = jnp.clip(y, 0.0, 6.0)
    o_ref[...] = ((y + 3.0) * (1.0 / 6.0)).astype(o_ref.dtype)


def _round_up(n, m):
    return ((n + m - 1) // m) * m


def model_forward(x, w_t, b2d, *, tb=512):
    """x: (B, IN_F) f32; w_t: (IN_F, OUT_F) f32 (torch fc1.weight transposed);
    b2d: (1, OUT_F) f32 (pre-shaped once at init)."""
    B = x.shape[0]

    # Batch tiling:
    #  * B <= 8           : one tile exactly the array size (full-dim exception).
    #  * 8 < B <= tb      : split into 2 parallel tiles so v7x megacore can use both TCs.
    #  * B > tb           : TB-row tiles; last tile may be ragged (partial block, masked writeback).
    if B <= 8:
        tb_eff = B
    elif B <= tb:
        tb_eff = _round_up(pl.cdiv(B, 2), 8)
    else:
        tb_eff = tb
    grid = pl.cdiv(B, tb_eff)

    return pl.pallas_call(
        fc1_clamp_kernel,
        out_shape=jax.ShapeDtypeStruct((B, OUT_F), jnp.float32),
        grid_spec=pltpu.PrefetchScalarGridSpec(
            num_scalar_prefetch=0,
            grid=(grid,),
            in_specs=[
                pl.BlockSpec((tb_eff, IN_F), lambda i: (i, 0)),   # x tile per grid step
                pl.BlockSpec((IN_F, OUT_F), lambda i: (0, 0)),    # W: constant -> VMEM-resident
                pl.BlockSpec((1, OUT_F), lambda i: (0, 0)),       # b: lane-dense 2D tile, resident
            ],
            out_specs=pl.BlockSpec((tb_eff, OUT_F), lambda i: (i, 0)),
        ),
        compiler_params=pltpu.CompilerParams(
            dimension_semantics=("parallel",),   # batch tiles shard across TCs (v7x megacore)
        ),
    )(x, w_t, b2d)


if __name__ == "__main__":
    key = jax.random.PRNGKey(0)
    kx, kw, kb, kx2 = jax.random.split(key, 4)

    # Deterministic parameters matching nn.Linear(192, 192) init scale (torch layout (out, in)).
    bound = 1.0 / jnp.sqrt(jnp.float32(IN_F))
    w = jax.random.uniform(kw, (OUT_F, IN_F), jnp.float32, -bound, bound)
    b = jax.random.uniform(kb, (OUT_F,), jnp.float32, -bound, bound)

    # One-time (init-path) prep: transpose W for x @ W layout and pre-shape bias to a 2D tile.
    w_t = jnp.asarray(w.T)            # (IN_F, OUT_F)
    b2d = jnp.asarray(b.reshape(1, OUT_F))

    def ref_fn(xv):
        y = xv @ w.T + b
        y = jnp.clip(y, 0.0, 6.0)     # module order: clamp first,
        return (y + 3.0) / 6.0        # then (y + 3) / 6

    # Input consistent with the module: (1, 192).  Single tile, grid length 1.
    x1 = jax.random.normal(kx, (1, IN_F), jnp.float32)
    out1 = jax.block_until_ready(model_forward(x1, w_t, b2d))
    assert out1.shape == (1, OUT_F)
    assert jnp.allclose(out1, ref_fn(x1), atol=1e-5, rtol=1e-5)

    # Medium batch: splits into 2 parallel tiles (v7x path), ragged last block (rows 16..19 of 32).
    x2 = jax.random.normal(kx2, (20, IN_F), jnp.float32)
    out2 = jax.block_until_ready(model_forward(x2, w_t, b2d))
    assert out2.shape == (20, OUT_F)
    assert jnp.allclose(out2, ref_fn(x2), atol=1e-5, rtol=1e-5)

    # Multi-tile grid path with a ragged final tile (grid = 3, tiles of 8 rows over 20 rows).
    out3 = jax.block_until_ready(model_forward(x2, w_t, b2d, tb=8))
    assert out3.shape == (20, OUT_F)
    assert jnp.allclose(out3, ref_fn(x2), atol=1e-5, rtol=1e-5)

    print("KERNEL_OK")
</pallas_src>

<mosaic_0001>
module attributes {stable_mosaic.version = 11 : i64} {
  func.func @fc1_clamp_kernel(%arg0: i32, %arg1: memref<1x192xf32, #tpu.memory_space<vmem>>, %arg2: memref<192x192xf32, #tpu.memory_space<vmem>>, %arg3: memref<1x192xf32, #tpu.memory_space<vmem>>, %arg4: memref<1x192xf32, #tpu.memory_space<vmem>>) attributes {dimension_semantics = [#tpu.dimension_semantics<parallel>], iteration_bounds = array<i64: 1>, scalar_prefetch = 0 : i64, scratch_operands = 0 : i64, tpu.core_type = #tpu.core_type<tc>, window_params = [{transform_indices = @transform_0, window_bounds = array<i64: 1, 192>}, {pipeline_mode = #tpu.pipeline_mode<synchronous>, transform_indices = @transform_1, window_bounds = array<i64: 192, 192>}, {pipeline_mode = #tpu.pipeline_mode<synchronous>, transform_indices = @transform_2, window_bounds = array<i64: 1, 192>}, {transform_indices = @transform_3, window_bounds = array<i64: 1, 192>}]} {
    %c0 = arith.constant 0 : index
    %c0_0 = arith.constant 0 : index
    %0 = vector.load %arg1[%c0, %c0_0] : memref<1x192xf32, #tpu.memory_space<vmem>>, vector<1x192xf32>
    %c0_1 = arith.constant 0 : index
    %c0_2 = arith.constant 0 : index
    %1 = vector.load %arg2[%c0_1, %c0_2] : memref<192x192xf32, #tpu.memory_space<vmem>>, vector<192x192xf32>
    %cst = arith.constant dense<0.000000e+00> : vector<1x192xf32>
    %2 = tpu.matmul %0, %1, %cst {dimension_numbers = #tpu.dot_dimension_numbers<[1], [0], [0], [1], [0, 0, 1, 1], [], []>} : vector<1x192xf32>, vector<192x192xf32>, vector<1x192xf32> -> vector<1x192xf32>
    %c0_3 = arith.constant 0 : index
    %c0_4 = arith.constant 0 : index
    %3 = vector.load %arg3[%c0_3, %c0_4] : memref<1x192xf32, #tpu.memory_space<vmem>>, vector<1x192xf32>
    %4 = arith.addf %2, %3 : vector<1x192xf32>
    %cst_5 = arith.constant 0.000000e+00 : f32
    %cst_6 = arith.constant 6.000000e+00 : f32
    %5 = vector.broadcast %cst_5 : f32 to vector<1x192xf32>
    %6 = arith.maximumf %5, %4 : vector<1x192xf32>
    %7 = vector.broadcast %cst_6 : f32 to vector<1x192xf32>
    %8 = arith.minimumf %7, %6 : vector<1x192xf32>
    %cst_7 = arith.constant 3.000000e+00 : f32
    %9 = vector.broadcast %cst_7 : f32 to vector<1x192xf32>
    %10 = arith.addf %8, %9 : vector<1x192xf32>
    %cst_8 = arith.constant 0.166666672 : f32
    %11 = vector.broadcast %cst_8 : f32 to vector<1x192xf32>
    %12 = arith.mulf %10, %11 : vector<1x192xf32>
    %c0_9 = arith.constant 0 : index
    %c0_10 = arith.constant 0 : index
    %13 = vector.load %arg4[%c0_9, %c0_10] : memref<1x192xf32, #tpu.memory_space<vmem>>, vector<1x192xf32>
    tpu.vector_store %arg4[%c0_9, %c0_10], %12 {strides = array<i32>} : memref<1x192xf32, #tpu.memory_space<vmem>>, vector<1x192xf32>,
    return
  }
  func.func @transform_0(%arg0: i32) -> (i32, i32) {
    %c0_i32 = arith.constant 0 : i32
    %c0_i32_0 = arith.constant 0 : i32
    return %arg0, %c0_i32 : i32, i32
  }
  func.func @transform_1(%arg0: i32) -> (i32, i32) {
    %c0_i32 = arith.constant 0 : i32
    %c0_i32_0 = arith.constant 0 : i32
    %c0_i32_1 = arith.constant 0 : i32
    return %c0_i32, %c0_i32_0 : i32, i32
  }
  func.func @transform_2(%arg0: i32) -> (i32, i32) {
    %c0_i32 = arith.constant 0 : i32
    %c0_i32_0 = arith.constant 0 : i32
    %c0_i32_1 = arith.constant 0 : i32
    return %c0_i32, %c0_i32_0 : i32, i32
  }
  func.func @transform_3(%arg0: i32) -> (i32, i32) {
    %c0_i32 = arith.constant 0 : i32
    %c0_i32_0 = arith.constant 0 : i32
    return %arg0, %c0_i32 : i32, i32
  }
}

</mosaic_0001>

<llo_original>
// kernel: tpu_custom_call.1
$region0: #{tpu_custom_call.1}
  #allocation0 [shape = 'u32[]', space=smem, size = 0x4, offset = 0x4, fixed_abs, tag = 'smem constant byte address 0x4 - core index']
  #allocation1 [shape = 'u32[144,128]{1,0:T(1,128)}', space=vmem, size = 0x12000, scoped, tag = 'internal scratch']
  %s0 = inlined_call_operand.hbm [shape: f32[1,192], index: 0, kind: input, shape index: {}]
  %s1 = inlined_call_operand.hbm [shape: f32[192,192], index: 1, kind: input, shape index: {}]
  %s2 = inlined_call_operand.vmem [shape: f32[1,192], index: 2, kind: input, shape index: {}]
  %s3 = inlined_call_operand.hbm [shape: f32[1,192], index: 3, kind: output, shape index: {}]
  %s4 = sld [smem:[#allocation0]]
  $region30: #{tpu_custom_call.1} parent=0
    _
  %s6 = ssub.s32 1, %s4
  %s7 = scalar_select 0, %s6, %s4
  $region1: #{tpu_custom_call.1} parent=0
    #allocation2 [shape = 'u8[1024]{0}', space=vmem, size = 0x400, scoped, tag = 'input window, operand 0, single buffered']
    #allocation3 [shape = 's32[1]{0}', space=sflag, size = 0x4, scoped, tag = 'scoped memory for tpu_custom_call.1']
    #allocation4 [shape = 's32[1]{0}', space=sflag, size = 0x4, scoped, tag = 'scoped memory for tpu_custom_call.1']
    #allocation5 [shape = 'u8[196608]{0}', space=vmem, size = 0x30000, scoped, tag = 'input window, operand 1, single buffered']
    #allocation6 [shape = 's32[1]{0}', space=sflag, size = 0x4, scoped, tag = 'scoped memory for tpu_custom_call.1']
    #allocation7 [shape = 'u8[1024]{0}', space=vmem, size = 0x400, scoped, tag = 'output window, operand 0, single buffered']
    %8 = vsyncpa [#allocation3], 0
    %9 = vsyncpa [#allocation6], 0
    %10 = vsyncpa [#allocation4], 0
    // Predicated region
    $region2: #{tpu_custom_call.1} parent=1 // pred_check
      _
    $region3: #{tpu_custom_call.1} parent=1 // pred_check_branch
      %12 = sbr.rel (0) target = $region5
    $region4: #{tpu_custom_call.1} parent=1 // pred_region
      %s14 = ssub.s32 32, 32
      %15 = vsyncadd [#allocation3], %s14
      %s17 = sshll.u32 [#allocation2], 4
      %s18 = int_to_ptr.vmem [resolvable:$true] %s17
      %20 = dma.hbm_to_vmem [thread:$0]  %s0, 32, %s18, [#allocation3]
    $region5: #{tpu_custom_call.1} parent=1 // pred_fallthru
      _
    // Predicated region
    $region6: #{tpu_custom_call.1} parent=1 // pred_check
      _
    $region7: #{tpu_custom_call.1} parent=1 // pred_check_branch
      %22 = sbr.rel (0) target = $region9
    $region8: #{tpu_custom_call.1} parent=1 // pred_region
      %s24 = ssub.s32 6144, 6144
      %25 = vsyncadd [#allocation6], %s24
      %s26 = sshll.u32 [#allocation5], 4
      %s27 = int_to_ptr.vmem [resolvable:$true] %s26
      %32 = dma.hbm_to_vmem [thread:$0]  %s1, 6144, %s27, [#allocation6], 256, 256, 16
    $region9: #{tpu_custom_call.1} parent=1 // pred_fallthru
      _
    // Predicated region
    $region10: #{tpu_custom_call.1} parent=1 // pred_check
      _
    $region11: #{tpu_custom_call.1} parent=1 // pred_check_branch
      %34 = sbr.rel (0) target = $region13
    $region12: #{tpu_custom_call.1} parent=1 // pred_region
      _
    $region13: #{tpu_custom_call.1} parent=1 // pred_fallthru
      _
    // Predicated region
    $region14: #{tpu_custom_call.1} parent=1 // pred_check
      _
    $region15: #{tpu_custom_call.1} parent=1 // pred_check_branch
      %36 = sbr.rel (0) target = $region17
    $region16: #{tpu_custom_call.1} parent=1 // pred_region
      %37 = dma.done [#allocation3], 32
    $region17: #{tpu_custom_call.1} parent=1 // pred_fallthru
      _
    // Predicated region
    $region18: #{tpu_custom_call.1} parent=1 // pred_check
      _
    $region19: #{tpu_custom_call.1} parent=1 // pred_check_branch
      %39 = sbr.rel (0) target = $region21
    $region20: #{tpu_custom_call.1} parent=1 // pred_region
      %40 = dma.done [#allocation6], 6144
    $region21: #{tpu_custom_call.1} parent=1 // pred_fallthru
      _
    %v41 = vld [vmem:[#allocation2] sm:$0x3]
    %v42 = vld [vmem:[#allocation5] sm:$0xff]
    %v43 = vld [vmem:[#allocation5 + $0x8] sm:$0xff]
    %v44 = vld [vmem:[#allocation5 + $0x10] sm:$0xff]
    %v45 = vld [vmem:[#allocation5 + $0x18] sm:$0xff]
    %v46 = vld [vmem:[#allocation5 + $0x20] sm:$0xff]
    %v47 = vld [vmem:[#allocation5 + $0x28] sm:$0xff]
    %v48 = vld [vmem:[#allocation5 + $0x30] sm:$0xff]
    %v49 = vld [vmem:[#allocation5 + $0x38] sm:$0xff]
    %v50 = vld [vmem:[#allocation5 + $0x40] sm:$0xff]
    %v51 = vld [vmem:[#allocation5 + $0x48] sm:$0xff]
    %v52 = vld [vmem:[#allocation5 + $0x50] sm:$0xff]
    %v53 = vld [vmem:[#allocation5 + $0x58] sm:$0xff]
    %v54 = vld [vmem:[#allocation5 + $0x60] sm:$0xff]
    %v55 = vld [vmem:[#allocation5 + $0x68] sm:$0xff]
    %v56 = vld [vmem:[#allocation5 + $0x70] sm:$0xff]
    %v57 = vld [vmem:[#allocation5 + $0x78] sm:$0xff]
    %v58 = vld [vmem:[#allocation5 + $0x80] sm:$0xff]
    %v59 = vld [vmem:[#allocation5 + $0x88] sm:$0xff]
    %v60 = vld [vmem:[#allocation5 + $0x90] sm:$0xff]
    %v61 = vld [vmem:[#allocation5 + $0x98] sm:$0xff]
    %v62 = vld [vmem:[#allocation5 + $0xa0] sm:$0xff]
    %v63 = vld [vmem:[#allocation5 + $0xa8] sm:$0xff]
    %v64 = vld [vmem:[#allocation5 + $0xb0] sm:$0xff]
    %v65 = vld [vmem:[#allocation5 + $0xb8] sm:$0xff]
    %v66 = vld [vmem:[#allocation5 + $0xc0] sm:$0xff]
    %v67 = vld [vmem:[#allocation5 + $0xc8] sm:$0xff]
    %v68 = vld [vmem:[#allocation5 + $0xd0] sm:$0xff]
    %v69 = vld [vmem:[#allocation5 + $0xd8] sm:$0xff]
    %v70 = vld [vmem:[#allocation5 + $0xe0] sm:$0xff]
    %v71 = vld [vmem:[#allocation5 + $0xe8] sm:$0xff]
    %v72 = vld [vmem:[#allocation5 + $0xf0] sm:$0xff]
    %v73 = vld [vmem:[#allocation5 + $0xf8] sm:$0xff]
    %v74 = vld [vmem:[#allocation5 + $0x100] sm:$0xff]
    %v75 = vld [vmem:[#allocation5 + $0x108] sm:$0xff]
    %v76 = vld [vmem:[#allocation5 + $0x110] sm:$0xff]
    %v77 = vld [vmem:[#allocation5 + $0x118] sm:$0xff]
    %v78 = vld [vmem:[#allocation5 + $0x120] sm:$0xff]
    %v79 = vld [vmem:[#allocation5 + $0x128] sm:$0xff]
    %v80 = vld [vmem:[#allocation5 + $0x130] sm:$0xff]
    %v81 = vld [vmem:[#allocation5 + $0x138] sm:$0xff]
    %v82 = vld [vmem:[#allocation5 + $0x140] sm:$0xff]
    %v83 = vld [vmem:[#allocation5 + $0x148] sm:$0xff]
    %v84 = vld [vmem:[#allocation5 + $0x150] sm:$0xff]
    %v85 = vld [vmem:[#allocation5 + $0x158] sm:$0xff]
    %v86 = vld [vmem:[#allocation5 + $0x160] sm:$0xff]
    %v87 = vld [vmem:[#allocation5 + $0x168] sm:$0xff]
    %v88 = vld [vmem:[#allocation5 + $0x170] sm:$0xff]
    %v89 = vld [vmem:[#allocation5 + $0x178] sm:$0xff]
    %v90 = vld [vmem:[%s2] sm:$0x3]
    %v92 = vlaneseq
    %v93 = vshrl.u32 %v92, 7
    %v94 = vsub.s32 0, %v93
    %v95 = vrot.slane %v41, %v94
    %v96 = vlaneseq
    %v97 = vshrl.u32 %v96, 7
    %v98 = vsub.s32 1, %v97
    %v99 = vrot.slane %v41, %v98
    %v102 = vlaneseq
    %v103 = vshrl.u32 %v102, 7
    %v104 = vsub.s32 0, %v103
    %v105 = vrot.slane %v90, %v104
    %v106 = vlaneseq
    %v107 = vshrl.u32 %v106, 7
    %v108 = vsub.s32 1, %v107
    %v109 = vrot.slane %v90, %v108
    %vm112 = vcmask 523264
    %v113 = vsel %vm112, %v99, 0
    %115 = vmatprep.subr.mxu0 %v43
    %116 = vmatpush1.msra.mxu0 %v42
    %117 = vmatprep.subr.mxu0 %v45
    %118 = vmatpush1.msra.mxu0 %v44
    %119 = vmatprep.subr.mxu0 %v47
    %120 = vmatpush1.msra.mxu0 %v46
    %121 = vmatprep.subr.mxu0 %v49
    %122 = vmatpush1.msra.mxu0 %v48
    %123 = vmatprep.subr.mxu0 %v51
    %124 = vmatpush1.msra.mxu0 %v50
    %125 = vmatprep.subr.mxu0 %v53
    %126 = vmatpush1.msra.mxu0 %v52
    %127 = vmatprep.subr.mxu0 %v55
    %128 = vmatpush1.msra.mxu0 %v54
    %129 = vmatprep.subr.mxu0 %v57
    %130 = vmatpush1.msra.mxu0 %v56
    %131 = vmatprep.subr.mxu0 %v59
    %132 = vmatpush1.msra.mxu0 %v58
    %133 = vmatprep.subr.mxu0 %v61
    %134 = vmatpush1.msra.mxu0 %v60
    %135 = vmatprep.subr.mxu0 %v63
    %136 = vmatpush1.msra.mxu0 %v62
    %137 = vmatprep.subr.mxu0 %v65
    %138 = vmatpush1.msra.mxu0 %v64
    %139 = vmatprep.subr.mxu0 %v67
    %140 = vmatpush1.msra.mxu0 %v66
    %141 = vmatprep.subr.mxu0 %v69
    %142 = vmatpush1.msra.mxu0 %v68
    %143 = vmatprep.subr.mxu0 %v71
    %144 = vmatpush1.msra.mxu0 %v70
    %145 = vmatprep.subr.mxu0 %v73
    %146 = vmatpush1.msra.mxu0 %v72
    %147 = vmatprep.subr.mxu0 %v75
    %148 = vmatpush1.msra.mxu0 %v74
    %149 = vmatprep.subr.mxu0 %v77
    %150 = vmatpush1.msra.mxu0 %v76
    %151 = vmatprep.subr.mxu0 %v79
    %152 = vmatpush1.msra.mxu0 %v78
    %153 = vmatprep.subr.mxu0 %v81
    %154 = vmatpush1.msra.mxu0 %v80
    %155 = vmatprep.subr.mxu0 %v83
    %156 = vmatpush1.msra.mxu0 %v82
    %157 = vmatprep.subr.mxu0 %v85
    %158 = vmatpush1.msra.mxu0 %v84
    %159 = vmatprep.subr.mxu0 %v87
    %160 = vmatpush1.msra.mxu0 %v86
    %161 = vmatprep.subr.mxu0 %v89
    %162 = vmatpush1.msra.mxu0 %v88
    %163 = vmatprep.subr.mxu0 0.0
    %164 = vmatpush1.msra.mxu0 0.0
    %165 = vmatprep.subr.mxu0 0.0
    %166 = vmatpush1.msra.mxu0 0.0
    %167 = vmatprep.subr.mxu0 0.0
    %168 = vmatpush1.msra.mxu0 0.0
    %169 = vmatprep.subr.mxu0 0.0
    %170 = vmatpush1.msra.mxu0 0.0
    %171 = vmatprep.subr.mxu0 0.0
    %172 = vmatpush1.msra.mxu0 0.0
    %173 = vmatprep.subr.mxu0 0.0
    %174 = vmatpush1.msra.mxu0 0.0
    %175 = vmatprep.subr.mxu0 0.0
    %176 = vmatpush1.msra.mxu0 0.0
    %177 = vmatprep.subr.mxu0 0.0
    %178 = vmatpush1.msra.mxu0 0.0
    %179 = vmatprep.mubr.f32.mxu0 %v113
    %180 = vmatmul.mubr.f32.gmra.mrb[0].mxu0 %v95
    %v181 = vpop.f32.mrb[0].mxu0
    %v182 = vadd.f32 %v105, %v181
    %v183 = vpop.f32.mrb[0].mxu0
    %v184 = vadd.f32 %v109, %v183
    %185 = vdwg.mxu0
    %v186 = vmax.f32 %v182, 0.0
    %v187 = vmax.f32 %v184, 0.0
    %v188 = vmin.f32 %v186, 6.0
    %v189 = vmin.f32 %v187, 6.0
    %v190 = vadd.f32 %v188, 3.0
    %v191 = vadd.f32 %v189, 3.0
    %v192 = vmul.f32 %v190, 0.16666667
    %v193 = vmul.f32 %v191, 0.16666667
    %v196 = vcombine.low %v192, %v193
    %v198 = vunpack.c.l.s4 1966171168
    %v199 = vunpack.c.0.s8 %v198
    %v200 = vlaneseq
    %v201 = vshrl.u32 %v200, 7
    %v202 = vsub.s32 %v199, %v201
    %v203 = vrot.slane %v196, %v202
    %v205 = vunpack.c.l.s4 1966171168
    %v206 = vunpack.c.0.s8 %v205
    %v207 = vlaneseq
    %v208 = vshrl.u32 %v207, 7
    %v209 = vsub.s32 %v206, %v208
    %v210 = vrot.slane %v203, %v209
    %v212 = vlaneseq
    %vm213 = vcmp.ge.s32.totalorder %v212, 0
    %vm214 = vcmp.lt.s32.totalorder %v212, 192
    %vm215 = vmand %vm213, %vm214
    %216 = vst.msk [vmem:[#allocation7] sm:$0x3] %vm215, %v210
    // Predicated region
    $region22: #{tpu_custom_call.1} parent=1 // pred_check
      _
    $region23: #{tpu_custom_call.1} parent=1 // pred_check_branch
      %218 = sbr.rel (0) target = $region25
    $region24: #{tpu_custom_call.1} parent=1 // pred_region
      %s220 = ssub.s32 32, 32
      %221 = vsyncadd [#allocation4], %s220
      %s223 = sshll.u32 [#allocation7], 4
      %s224 = int_to_ptr.vmem [resolvable:$true] %s223
      %226 = dma.vmem_to_hbm [thread:$0]  %s224, 32, %s3, [#allocation4]
    $region25: #{tpu_custom_call.1} parent=1 // pred_fallthru
      _
    // Predicated region
    $region26: #{tpu_custom_call.1} parent=1 // pred_check
      _
    $region27: #{tpu_custom_call.1} parent=1 // pred_check_branch
      %228 = sbr.rel (0) target = $region29
    $region28: #{tpu_custom_call.1} parent=1 // pred_region
      %229 = dma.done [#allocation4], 32
    $region29: #{tpu_custom_call.1} parent=1 // pred_fallthru
      _
    %230 = vsyncpa [#allocation3], 1
    %231 = vsyncpa [#allocation6], 1
    %232 = vsyncpa [#allocation4], 1

</llo_original>
